<compile_context>
chip_gen: v7x
topology: tpu7x:2x2x1
jax: 0.10.0
libtpu: 0.0.40
codegen_flags: <defaults>
</compile_context>

<pallas_src>
import jax
import jax.numpy as jnp
from jax.experimental import pallas as pl
from jax.experimental.pallas import tpu as pltpu


def _attention_kernel(x_ref, w_ref, o_ref, acc_ref):
    # x_ref:   (TB, S, TH) VMEM tile of the input (TH = H chunk)
    # w_ref:   (1, TH)     VMEM, shared Linear weight chunk (torch layout)
    # o_ref:   (TB, S)     VMEM, lane-dense softmax output (resident across H steps)
    # acc_ref: (TB, S)     VMEM f32 scratch, score accumulator across H chunks
    h = pl.program_id(1)

    @pl.when(h == 0)
    def _():
        acc_ref[...] = jnp.zeros_like(acc_ref)

    x = x_ref[...].astype(jnp.float32)            # (TB, S, TH)
    w = w_ref[...].astype(jnp.float32)            # (1, TH) -> broadcasts
    # Linear(H -> 1) chunk as VPU multiply + lane reduce (no N=1 MXU round-trip).
    acc_ref[...] += jnp.sum(x * w, axis=-1)       # (TB, S), S on the lane axis

    @pl.when(h == pl.num_programs(1) - 1)
    def _():
        # Softmax over the sequence axis (== dim=1 of the PyTorch (B,S,1) output).
        s = acc_ref[...]
        m = jnp.max(s, axis=-1, keepdims=True)    # (TB, 1)
        e = jnp.exp(s - m)                        # (TB, S)
        denom = jnp.sum(e, axis=-1, keepdims=True)
        # EUP approx reciprocal (free slot) + one Newton step for f32 parity.
        inv = pl.reciprocal(denom, approx=True)
        inv = inv * (2.0 - denom * inv)
        o_ref[...] = (e * inv).astype(o_ref.dtype)


def _target_tile_bytes():
    """Per-chip input tile budget (per buffer, double-buffered by Pallas)."""
    kind = ""
    try:
        kind = jax.devices()[0].device_kind.lower()
    except Exception:
        pass
    if any(t in kind for t in ("v2", "v3", "v4")):
        return 4 << 20
    if "v5" in kind and ("lite" in kind or "v5e" in kind):
        return 6 << 20        # v5e: 16 MiB scoped-VMEM default -> stay modest
    return 8 << 20            # v6e / v7x: 32 MiB scoped default, bigger tiles pay off


def _choose_tiles(B, S, H, itemsize, target_bytes):
    """Pick (tb, th): batch rows per block and H-chunk size."""
    # --- H chunk: only if even the minimum batch block blows the budget -------
    th = H
    min_rows = 8 if B >= 8 else B
    if min_rows * S * H * itemsize > target_bytes and H % 128 == 0:
        cand = (target_bytes // max(min_rows * S * itemsize, 1) // 128) * 128
        cand = max(cand, 128)
        while H % cand != 0:          # terminates: 128 always divides H here
            cand -= 128
        th = cand
    # TODO(synk): when H % 128 != 0 AND a single 8-row block still exceeds the
    # budget, pad H to a multiple of 128 (or pack (S,H) lane-dense) instead of
    # relying on the raised vmem limit below.

    # --- batch rows per block --------------------------------------------------
    if B <= 8:
        tb = B                                        # full batch, single block
    else:
        row_bytes = max(S * th * itemsize, 1)
        tb = (target_bytes // row_bytes // 8) * 8
        tb = max(min(tb, B), 8)                       # never 0 (OOM fix), >= 8
        tb = min(tb, max(((B + 15) // 16) * 8, 8))    # >= 2 batch steps (2 TCs)
        gb = -(-B // tb)
        while gb > 1 and gb % 2 == 1 and tb > 8:      # prefer an even step count
            tb -= 8
            gb = -(-B // tb)
    return tb, th


def attention_forward(x, w, b=None):
    """x: (B, S, H); w: (1, H) torch Linear weight; b: (1, 1) bias (unused: softmax
    over the scores is invariant to a scalar shift, so the bias cannot change the
    output).  Returns softmax(x @ w.T + b, axis=1) with shape (B, S, 1)."""
    del b
    B, S, H = x.shape
    itemsize = x.dtype.itemsize
    w_itemsize = w.dtype.itemsize

    target_bytes = _target_tile_bytes()
    tb, th = _choose_tiles(B, S, H, itemsize, target_bytes)
    grid = (pl.cdiv(B, tb), H // th)

    # Explicit VMEM budget: double-buffered x, w, out + the f32 accumulator.
    x_tile = tb * S * th * itemsize
    out_tile = tb * S * itemsize
    w_tile = th * w_itemsize
    acc_bytes = tb * S * 4
    vmem_limit = min(2 * (x_tile + out_tile + w_tile) + acc_bytes + (16 << 20),
                     64 << 20)

    scores = pl.pallas_call(
        _attention_kernel,
        out_shape=jax.ShapeDtypeStruct((B, S), x.dtype),
        grid_spec=pltpu.PrefetchScalarGridSpec(
            num_scalar_prefetch=0,
            grid=grid,
            in_specs=[
                pl.BlockSpec((tb, S, th), lambda i, h: (i, 0, h)),   # x tile
                pl.BlockSpec((1, th), lambda i, h: (0, h)),          # weight chunk
            ],
            out_specs=pl.BlockSpec((tb, S), lambda i, h: (i, 0)),    # lane-dense scores
            scratch_shapes=[pltpu.VMEM((tb, S), jnp.float32)],       # score accumulator
        ),
        compiler_params=pltpu.CompilerParams(
            dimension_semantics=("parallel", "arbitrary"),
            vmem_limit_bytes=vmem_limit,
        ),
        cost_estimate=pl.CostEstimate(
            flops=2 * B * S * H,
            transcendentals=B * S,
            bytes_accessed=B * S * H * itemsize + B * S * itemsize + H * w_itemsize,
        ),
    )(x, w)

    # Match the PyTorch module's (B, S, 1) output shape.
    return scores[..., None]


def reference_forward(x, w, b):
    s = jnp.einsum("bsh,oh->bso", x, w) + b[0, 0]
    return jax.nn.softmax(s, axis=1)


if __name__ == "__main__":
    B, S, H = 2, 8, 32  # batch, seq, hidden_size

    key = jax.random.PRNGKey(0)
    kx, kw, kb = jax.random.split(key, 3)

    x = jax.random.normal(kx, (B, S, H), dtype=jnp.float32)
    # Deterministic "Linear(hidden_size, 1)" params (torch layout: (1, H) weight).
    w = jax.random.normal(kw, (1, H), dtype=jnp.float32) * (1.0 / jnp.sqrt(H))
    b = jax.random.normal(kb, (1, 1), dtype=jnp.float32) * 0.1

    out = attention_forward(x, w, b)
    out = jax.block_until_ready(out)

    ref = reference_forward(x, w, b)
    assert out.shape == (B, S, 1)
    assert jnp.allclose(out, ref, atol=1e-5, rtol=1e-5)

    print("KERNEL_OK")
</pallas_src>

<mosaic_0001>
module attributes {stable_mosaic.version = 11 : i64} {
  func.func @_attention_kernel(%arg0: i32, %arg1: i32, %arg2: memref<2x8x32xf32, #tpu.memory_space<vmem>>, %arg3: memref<1x32xf32, #tpu.memory_space<vmem>>, %arg4: memref<2x8xf32, #tpu.memory_space<vmem>>, %arg5: memref<2x8xf32, #tpu.memory_space<vmem>>) attributes {dimension_semantics = [#tpu.dimension_semantics<parallel>, #tpu.dimension_semantics<arbitrary>], iteration_bounds = array<i64: 1, 1>, scalar_prefetch = 0 : i64, scratch_operands = 1 : i64, tpu.core_type = #tpu.core_type<tc>, window_params = [{transform_indices = @transform_0, window_bounds = array<i64: 2, 8, 32>}, {transform_indices = @transform_1, window_bounds = array<i64: 1, 32>}, {transform_indices = @transform_2, window_bounds = array<i64: 2, 8>}]} {
    %c0_i32 = arith.constant 0 : i32
    %0 = arith.cmpi eq, %arg1, %c0_i32 : i32
    %1 = arith.extui %0 : i1 to i32
    %c0_i32_0 = arith.constant 0 : i32
    %2 = arith.cmpi ne, %1, %c0_i32_0 : i32
    scf.if %2 {
      %cst_11 = arith.constant 0.000000e+00 : f32
      %15 = vector.broadcast %cst_11 : f32 to vector<2x8xf32>
      %c0_12 = arith.constant 0 : index
      %c0_13 = arith.constant 0 : index
      %16 = vector.load %arg5[%c0_12, %c0_13] : memref<2x8xf32, #tpu.memory_space<vmem>>, vector<2x8xf32>
      tpu.vector_store %arg5[%c0_12, %c0_13], %15 {strides = array<i32>} : memref<2x8xf32, #tpu.memory_space<vmem>>, vector<2x8xf32>,
    } else {
    }
    %c0 = arith.constant 0 : index
    %c0_1 = arith.constant 0 : index
    %c0_2 = arith.constant 0 : index
    %3 = vector.load %arg2[%c0, %c0_1, %c0_2] : memref<2x8x32xf32, #tpu.memory_space<vmem>>, vector<2x8x32xf32>
    %c0_3 = arith.constant 0 : index
    %c0_4 = arith.constant 0 : index
    %4 = vector.load %arg3[%c0_3, %c0_4] : memref<1x32xf32, #tpu.memory_space<vmem>>, vector<1x32xf32>
    %c0_5 = arith.constant 0 : index
    %c0_6 = arith.constant 0 : index
    %5 = vector.load %arg5[%c0_5, %c0_6] : memref<2x8xf32, #tpu.memory_space<vmem>>, vector<2x8xf32>
    %6 = vector.shape_cast %4 : vector<1x32xf32> to vector<1x1x32xf32>
    %7 = vector.broadcast %6 : vector<1x1x32xf32> to vector<2x8x32xf32>
    %8 = arith.mulf %3, %7 : vector<2x8x32xf32>
    %cst = arith.constant dense<0.000000e+00> : vector<2x8xf32>
    %9 = vector.multi_reduction <add>, %8, %cst [2] : vector<2x8x32xf32> to vector<2x8xf32>
    %10 = arith.addf %5, %9 : vector<2x8xf32>
    %c0_7 = arith.constant 0 : index
    %c0_8 = arith.constant 0 : index
    %11 = vector.load %arg5[%c0_7, %c0_8] : memref<2x8xf32, #tpu.memory_space<vmem>>, vector<2x8xf32>
    tpu.vector_store %arg5[%c0_7, %c0_8], %10 {strides = array<i32>} : memref<2x8xf32, #tpu.memory_space<vmem>>, vector<2x8xf32>,
    %c0_i32_9 = arith.constant 0 : i32
    %12 = arith.cmpi eq, %arg1, %c0_i32_9 : i32
    %13 = arith.extui %12 : i1 to i32
    %c0_i32_10 = arith.constant 0 : i32
    %14 = arith.cmpi ne, %13, %c0_i32_10 : i32
    scf.if %14 {
      %c0_11 = arith.constant 0 : index
      %c0_12 = arith.constant 0 : index
      %15 = vector.load %arg5[%c0_11, %c0_12] : memref<2x8xf32, #tpu.memory_space<vmem>>, vector<2x8xf32>
      %cst_13 = arith.constant dense<0xFF800000> : vector<2xf32>
      %16 = vector.multi_reduction <maximumf>, %15, %cst_13 [1] : vector<2x8xf32> to vector<2xf32>
      %17 = vector.shape_cast %16 : vector<2xf32> to vector<2x1xf32>
      %18 = vector.broadcast %17 : vector<2x1xf32> to vector<2x8xf32>
      %19 = arith.subf %15, %18 : vector<2x8xf32>
      %20 = math.exp %19 : vector<2x8xf32>
      %cst_14 = arith.constant dense<0.000000e+00> : vector<2xf32>
      %21 = vector.multi_reduction <add>, %20, %cst_14 [1] : vector<2x8xf32> to vector<2xf32>
      %22 = vector.shape_cast %21 : vector<2xf32> to vector<2x1xf32>
      %23 = tpu.reciprocal %22 {approx = true} : vector<2x1xf32> -> vector<2x1xf32>
      %24 = arith.mulf %22, %23 : vector<2x1xf32>
      %cst_15 = arith.constant 2.000000e+00 : f32
      %25 = vector.broadcast %cst_15 : f32 to vector<2x1xf32>
      %26 = arith.subf %25, %24 : vector<2x1xf32>
      %27 = arith.mulf %23, %26 : vector<2x1xf32>
      %28 = vector.broadcast %27 : vector<2x1xf32> to vector<2x8xf32>
      %29 = arith.mulf %20, %28 : vector<2x8xf32>
      %c0_16 = arith.constant 0 : index
      %c0_17 = arith.constant 0 : index
      %30 = vector.load %arg4[%c0_16, %c0_17] : memref<2x8xf32, #tpu.memory_space<vmem>>, vector<2x8xf32>
      tpu.vector_store %arg4[%c0_16, %c0_17], %29 {strides = array<i32>} : memref<2x8xf32, #tpu.memory_space<vmem>>, vector<2x8xf32>,
    } else {
    }
    return
  }
  func.func @transform_0(%arg0: i32, %arg1: i32) -> (i32, i32, i32) {
    %c0_i32 = arith.constant 0 : i32
    %c0_i32_0 = arith.constant 0 : i32
    return %arg0, %c0_i32, %arg1 : i32, i32, i32
  }
  func.func @transform_1(%arg0: i32, %arg1: i32) -> (i32, i32) {
    %c0_i32 = arith.constant 0 : i32
    %c0_i32_0 = arith.constant 0 : i32
    return %c0_i32, %arg1 : i32, i32
  }
  func.func @transform_2(%arg0: i32, %arg1: i32) -> (i32, i32) {
    %c0_i32 = arith.constant 0 : i32
    %c0_i32_0 = arith.constant 0 : i32
    return %arg0, %c0_i32 : i32, i32
  }
}

</mosaic_0001>

<llo_original>
// kernel: tpu_custom_call.1
$region0: #{tpu_custom_call.1}
  #allocation0 [shape = 'u32[]', space=smem, size = 0x4, offset = 0x4, fixed_abs, tag = 'smem constant byte address 0x4 - core index']
  #allocation1 [shape = 'u32[144,128]{1,0:T(1,128)}', space=vmem, size = 0x12000, scoped, tag = 'internal scratch']
  #allocation2 [shape = 'f32[2,8]{1,0:T(2,128)}', space=vmem, size = 0x400, scoped, tag = 'scratch operand']
  %s0 = inlined_call_operand.hbm [shape: f32[2,8,32], index: 0, kind: input, shape index: {}]
  %s1 = inlined_call_operand.vmem [shape: f32[1,32], index: 1, kind: input, shape index: {}]
  %s2 = inlined_call_operand.hbm [shape: f32[2,8], index: 2, kind: output, shape index: {}]
  %s3 = sld [smem:[#allocation0]]
  $region30: #{tpu_custom_call.1} parent=0
    _
  %s5 = ssub.s32 1, %s3
  %s6 = scalar_select 0, %s5, %s3
  $region1: #{tpu_custom_call.1} parent=0
    #allocation3 [shape = 'u8[8192]{0}', space=vmem, size = 0x2000, scoped, tag = 'input window, operand 0, single buffered']
    #allocation4 [shape = 's32[1]{0}', space=sflag, size = 0x4, scoped, tag = 'scoped memory for tpu_custom_call.1']
    #allocation5 [shape = 's32[1]{0}', space=sflag, size = 0x4, scoped, tag = 'scoped memory for tpu_custom_call.1']
    #allocation6 [shape = 'u8[1024]{0}', space=vmem, size = 0x400, scoped, tag = 'output window, operand 0, single buffered']
    %7 = vsyncpa [#allocation4], 0
    %8 = vsyncpa [#allocation5], 0
    // Predicated region
    $region2: #{tpu_custom_call.1} parent=1 // pred_check
      _
    $region3: #{tpu_custom_call.1} parent=1 // pred_check_branch
      %10 = sbr.rel (0) target = $region5
    $region4: #{tpu_custom_call.1} parent=1 // pred_region
      %s12 = ssub.s32 256, 256
      %13 = vsyncadd [#allocation4], %s12
      %s14 = sshll.u32 [#allocation3], 4
      %s15 = int_to_ptr.vmem [resolvable:$true] %s14
      %20 = dma.hbm_to_vmem [thread:$0]  %s0, 256, %s15, [#allocation4], 128, 128, 8
    $region5: #{tpu_custom_call.1} parent=1 // pred_fallthru
      _
    // Predicated region
    $region6: #{tpu_custom_call.1} parent=1 // pred_check
      _
    $region7: #{tpu_custom_call.1} parent=1 // pred_check_branch
      %22 = sbr.rel (0) target = $region9
    $region8: #{tpu_custom_call.1} parent=1 // pred_region
      _
    $region9: #{tpu_custom_call.1} parent=1 // pred_fallthru
      _
    // Predicated region
    $region10: #{tpu_custom_call.1} parent=1 // pred_check
      _
    $region11: #{tpu_custom_call.1} parent=1 // pred_check_branch
      %24 = sbr.rel (0) target = $region13
    $region12: #{tpu_custom_call.1} parent=1 // pred_region
      %25 = dma.done [#allocation4], 256
    $region13: #{tpu_custom_call.1} parent=1 // pred_fallthru
      _
    %p26 = scmp.eq.s32.totalorder 0, 0
    // Predicated region
    $region14: #{tpu_custom_call.1} parent=1 // pred_check
      %p27 = pneg %p26
    $region15: #{tpu_custom_call.1} parent=1 // pred_check_branch
      %29 = sbr.rel (%p27) target = $region17
    $region16: #{tpu_custom_call.1} parent=1 // pred_region
      %vm30 = vcmask 58368
      %31 = vst.msk [vmem:[#allocation2] sm:$0x3] %vm30, 0.0
    $region17: #{tpu_custom_call.1} parent=1 // pred_fallthru
      _
    %v32 = vld [vmem:[#allocation3] sm:$0xff]
    %v33 = vld [vmem:[#allocation3 + $0x8] sm:$0xff]
    %v34 = vld [vmem:[%s1] sm:$0x1]
    %v35 = vld [vmem:[#allocation2] sm:$0x3]
    %v37 = vlaneseq
    %v38 = vshrl.u32 %v37, 7
    %v39 = vsub.s32 0, %v38
    %v40 = vrot.slane %v34, %v39
    %v42 = vmul.f32 %v32, %v40
    %v43 = vmul.f32 %v33, %v40
    %vm44 = vcmask 261120
    %v45 = vsel %vm44, %v42, 0.0
    %46 = vadd.xlane.f32.xlu0 %v45
    %v47 = vpop.xlane.xlu0 %46
    %v48 = vsel %vm44, %v43, 0.0
    %49 = vadd.xlane.f32.xlu0 %v48
    %v50 = vpop.xlane.xlu0 %49
    %v53 = vlaneseq
    %v54 = vand.u32 %v53, 127
    %v55 = vlaneseq
    %v56 = vshrl.u32 %v55, 7
    %v57 = vsub.s32 %v54, %v56
    %v58 = vrot.slane %v47, %v57
    %v59 = vlaneseq
    %v60 = vshrl.u32 %v59, 7
    %v61 = vsub.s32 %v54, %v60
    %v62 = vrot.slane %v50, %v61
    %vm63 = vcmask 1041409
    %v64 = vsel %vm63, %v62, %v58
    %v66 = vadd.f32 %v35, %v64
    %vm67 = vcmask 58368
    %68 = vst.msk [vmem:[#allocation2] sm:$0x3] %vm67, %v66
    // Predicated region
    $region18: #{tpu_custom_call.1} parent=1 // pred_check
      %p69 = pneg %p26
    $region19: #{tpu_custom_call.1} parent=1 // pred_check_branch
      %71 = sbr.rel (%p69) target = $region21
    $region20: #{tpu_custom_call.1} parent=1 // pred_region
      %v72 = vld [vmem:[#allocation2] sm:$0x3]
      %v73 = vsel %vm67, %v72, -inf
      %74 = vmax.xlane.f32.xlu0 %v73
      %v75 = vpop.xlane.xlu0 %74
      %v76 = vsub.f32 %v72, %v75
      %v77 = vmul.f32 %v76, 1.442695
      %v78 = vpow.pop %v77
      %v79 = vsel %vm67, %v78, 0.0
      %80 = vadd.xlane.f32.xlu0 %v79
      %v81 = vpop.xlane.xlu0 %80
      %v82 = vrcp.pop %v81
      %v83 = vmul.f32 %v81, %v82
      %v84 = vsub.f32 2.0, %v83
      %v85 = vmul.f32 %v82, %v84
      %v86 = vmul.f32 %v78, %v85
      %87 = vst.msk [vmem:[#allocation6] sm:$0x3] %vm67, %v86
    $region21: #{tpu_custom_call.1} parent=1 // pred_fallthru
      _
    // Predicated region
    $region22: #{tpu_custom_call.1} parent=1 // pred_check
      _
    $region23: #{tpu_custom_call.1} parent=1 // pred_check_branch
      %89 = sbr.rel (0) target = $region25
    $region24: #{tpu_custom_call.1} parent=1 // pred_region
      %s91 = ssub.s32 32, 32
      %92 = vsyncadd [#allocation5], %s91
      %s94 = sshll.u32 [#allocation6], 4
      %s95 = int_to_ptr.vmem [resolvable:$true] %s94
      %97 = dma.vmem_to_hbm [thread:$0]  %s95, 32, %s2, [#allocation5]
    $region25: #{tpu_custom_call.1} parent=1 // pred_fallthru
      _
    // Predicated region
    $region26: #{tpu_custom_call.1} parent=1 // pred_check
      _
    $region27: #{tpu_custom_call.1} parent=1 // pred_check_branch
      %99 = sbr.rel (0) target = $region29
    $region28: #{tpu_custom_call.1} parent=1 // pred_region
      %100 = dma.done [#allocation5], 32
    $region29: #{tpu_custom_call.1} parent=1 // pred_fallthru
      _
    %101 = vsyncpa [#allocation4], 1
    %102 = vsyncpa [#allocation5], 1

</llo_original>
